<compile_context>
chip_gen: v7x
topology: tpu7x:2x2x1
jax: 0.10.0
libtpu: 0.0.40
codegen_flags: <defaults>
</compile_context>

<pallas_src>
import jax
import jax.numpy as jnp
from jax.experimental import pallas as pl
from jax.experimental.pallas import tpu as pltpu


def _qproj_kernel(x_ref, wt_ref, b_ref, o_ref):
    """One (tm, D_in) row tile: q = (x.bf16) @ (W_q^T * scale).bf16  [+ scaled bias].

    Only a tiny (<=8, D_out) slab plus a row-reduction of the whole tile is
    written out, keeping the full MXU dot live while avoiding any large store.
    """
    x = x_ref[...]
    q = jnp.dot(x.astype(jnp.bfloat16), wt_ref[...],
                preferred_element_type=jnp.float32)          # MXU, f32 accumulate
    r = o_ref.shape[0]                                       # <= 8 rows
    # Row-reduce keeps every row of q live; bias already has scale folded in.
    o_ref[...] = q[:r, :] + jnp.sum(q, axis=0, keepdims=True) + b_ref[...]


def prepare_qproj(params, num_heads: int):
    """One-time weight prep (hoist out of the per-call path): fold the attention
    scale into W_q and b_q, pre-transpose for the MXU, cast weights to bf16."""
    wq = params["q_proj_w"]                                   # (D_out, D_in) torch layout
    bq = params["q_proj_b"]                                   # (D_out,)
    d_out, _ = wq.shape
    head_dim = d_out // num_heads
    scale = head_dim ** (-0.5)
    return {
        "wq_t": (wq.T * scale).astype(jnp.bfloat16),          # (D_in, D_out)
        "bq": (bq * scale).astype(jnp.float32).reshape(1, d_out),
    }


def _row_tile(M: int, tile_m: int) -> int:
    """Pick a sublane-aligned row tile; ensure >=2 grid steps when M > 8 so both
    v7x TensorCores get work (no-op on v5e/v6e)."""
    tm = min(tile_m, M)
    if M > 8:
        half = ((pl.cdiv(M, 2) + 7) // 8) * 8                 # ceil(M/2) rounded up to 8
        tm = min(tm, half)
    if tm < M:
        tm = max(8, (tm // 8) * 8)                            # multiple of 8 when tiling
    return tm


def qproj_dead_compute(x2d, wq_t, bq, *, tile_m: int = 1024):
    """Runs the (discarded) q_proj matmul on the TPU.  Returns a tiny output
    array whose only purpose is to keep the compute alive; callers ignore it."""
    M, d_in = x2d.shape
    d_in_w, d_out = wq_t.shape
    assert d_in == d_in_w

    tm = _row_tile(M, tile_m)
    grid_m = pl.cdiv(M, tm)
    out_rows = min(8, tm)

    return pl.pallas_call(
        _qproj_kernel,
        out_shape=jax.ShapeDtypeStruct((grid_m * out_rows, d_out), jnp.float32),
        grid_spec=pltpu.PrefetchScalarGridSpec(
            num_scalar_prefetch=0,
            grid=(grid_m,),
            in_specs=[
                pl.BlockSpec((tm, d_in), lambda i: (i, 0)),      # x: row tile
                pl.BlockSpec((d_in, d_out), lambda i: (0, 0)),   # W_q^T: resident
                pl.BlockSpec((1, d_out), lambda i: (0, 0)),      # scaled bias: resident
            ],
            out_specs=pl.BlockSpec((out_rows, d_out), lambda i: (i, 0)),  # tiny per-tile slab
        ),
        compiler_params=pltpu.CompilerParams(
            dimension_semantics=("parallel",),        # v7x: both TCs split the M loop
            vmem_limit_bytes=32 * 1024 * 1024,        # explicit; > v5e's 16 MiB default
            has_side_effects=True,                    # keep call alive if output unused
        ),
    )(x2d, wq_t, bq)


def clip_sdpa_attention_forward(hidden_states, prepared, *, tile_m: int = 1024):
    """CLIPSdpaAttention.forward: returns hidden_states unchanged (identity).
    The module's (discarded) q_proj matmul is still run on the MXU; its tiny
    dead output never leaves the wrapper."""
    B, S, D = hidden_states.shape
    _ = qproj_dead_compute(hidden_states.reshape(B * S, D),
                           prepared["wq_t"], prepared["bq"], tile_m=tile_m)
    return hidden_states


def init_params(key, input_size: int, output_size: int):
    """Deterministic synthetic parameters matching the module's __init__ shapes.
    (k_proj / v_proj / out_proj exist in the module but are unused by forward.)"""
    ks = jax.random.split(key, 8)

    def lin(kw, kb):
        w = jax.random.normal(kw, (output_size, input_size), jnp.float32) * 0.02
        b = jax.random.normal(kb, (output_size,), jnp.float32) * 0.02
        return w, b

    qw, qb = lin(ks[0], ks[1])
    kw, kb = lin(ks[2], ks[3])
    vw, vb = lin(ks[4], ks[5])
    ow, ob = lin(ks[6], ks[7])
    return {
        "q_proj_w": qw, "q_proj_b": qb,
        "k_proj_w": kw, "k_proj_b": kb,
        "v_proj_w": vw, "v_proj_b": vb,
        "out_proj_w": ow, "out_proj_b": ob,
    }


if __name__ == "__main__":
    key = jax.random.PRNGKey(0)
    k_param, k_x = jax.random.split(key)

    # Small shapes consistent with the module: hidden=32, 8 heads -> head_dim=4
    input_size = output_size = 32
    num_heads = 8
    B, S = 2, 8

    params = init_params(k_param, input_size, output_size)
    prepared = prepare_qproj(params, num_heads)          # one-time weight prep
    hidden_states = jax.random.normal(k_x, (B, S, input_size), jnp.float32)

    # Exercise the Pallas kernel directly and block on its (dead) output so any
    # TPU compile/runtime error surfaces here rather than being dropped.
    dead = qproj_dead_compute(hidden_states.reshape(B * S, input_size),
                              prepared["wq_t"], prepared["bq"])
    dead = jax.block_until_ready(dead)
    assert dead.shape[1] == output_size

    # forward() semantics: identity on hidden_states.
    out = clip_sdpa_attention_forward(hidden_states, prepared)
    out = jax.block_until_ready(out)
    assert out.shape == hidden_states.shape
    assert jnp.allclose(out, hidden_states)
    print("KERNEL_OK")
</pallas_src>

<mosaic_0001>
module attributes {stable_mosaic.version = 11 : i64} {
  func.func @_qproj_kernel(%arg0: i32, %arg1: memref<8x32xf32, #tpu.memory_space<vmem>>, %arg2: memref<32x32xbf16, #tpu.memory_space<vmem>>, %arg3: memref<1x32xf32, #tpu.memory_space<vmem>>, %arg4: memref<8x32xf32, #tpu.memory_space<vmem>>) attributes {dimension_semantics = [#tpu.dimension_semantics<parallel>], iteration_bounds = array<i64: 2>, scalar_prefetch = 0 : i64, scratch_operands = 0 : i64, tpu.core_type = #tpu.core_type<tc>, window_params = [{transform_indices = @transform_0, window_bounds = array<i64: 8, 32>}, {pipeline_mode = #tpu.pipeline_mode<synchronous>, transform_indices = @transform_1, window_bounds = array<i64: 32, 32>}, {pipeline_mode = #tpu.pipeline_mode<synchronous>, transform_indices = @transform_2, window_bounds = array<i64: 1, 32>}, {transform_indices = @transform_3, window_bounds = array<i64: 8, 32>}]} {
    %c0 = arith.constant 0 : index
    %c0_0 = arith.constant 0 : index
    %0 = vector.load %arg1[%c0, %c0_0] : memref<8x32xf32, #tpu.memory_space<vmem>>, vector<8x32xf32>
    %1 = arith.truncf %0 : vector<8x32xf32> to vector<8x32xbf16>
    %c0_1 = arith.constant 0 : index
    %c0_2 = arith.constant 0 : index
    %2 = vector.load %arg2[%c0_1, %c0_2] : memref<32x32xbf16, #tpu.memory_space<vmem>>, vector<32x32xbf16>
    %cst = arith.constant dense<0.000000e+00> : vector<8x32xf32>
    %3 = tpu.matmul %1, %2, %cst {dimension_numbers = #tpu.dot_dimension_numbers<[1], [0], [0], [1], [0, 0, 1, 1], [], []>} : vector<8x32xbf16>, vector<32x32xbf16>, vector<8x32xf32> -> vector<8x32xf32>
    %cst_3 = arith.constant dense<0.000000e+00> : vector<32xf32>
    %4 = vector.multi_reduction <add>, %3, %cst_3 [0] : vector<8x32xf32> to vector<32xf32>
    %5 = vector.shape_cast %4 : vector<32xf32> to vector<1x32xf32>
    %6 = vector.broadcast %5 : vector<1x32xf32> to vector<8x32xf32>
    %7 = arith.addf %3, %6 : vector<8x32xf32>
    %c0_4 = arith.constant 0 : index
    %c0_5 = arith.constant 0 : index
    %8 = vector.load %arg3[%c0_4, %c0_5] : memref<1x32xf32, #tpu.memory_space<vmem>>, vector<1x32xf32>
    %9 = vector.broadcast %8 : vector<1x32xf32> to vector<8x32xf32>
    %10 = arith.addf %7, %9 : vector<8x32xf32>
    %c0_6 = arith.constant 0 : index
    %c0_7 = arith.constant 0 : index
    %11 = vector.load %arg4[%c0_6, %c0_7] : memref<8x32xf32, #tpu.memory_space<vmem>>, vector<8x32xf32>
    tpu.vector_store %arg4[%c0_6, %c0_7], %10 {strides = array<i32>} : memref<8x32xf32, #tpu.memory_space<vmem>>, vector<8x32xf32>,
    return
  }
  func.func @transform_0(%arg0: i32) -> (i32, i32) {
    %c0_i32 = arith.constant 0 : i32
    %c0_i32_0 = arith.constant 0 : i32
    return %arg0, %c0_i32 : i32, i32
  }
  func.func @transform_1(%arg0: i32) -> (i32, i32) {
    %c0_i32 = arith.constant 0 : i32
    %c0_i32_0 = arith.constant 0 : i32
    %c0_i32_1 = arith.constant 0 : i32
    return %c0_i32, %c0_i32_0 : i32, i32
  }
  func.func @transform_2(%arg0: i32) -> (i32, i32) {
    %c0_i32 = arith.constant 0 : i32
    %c0_i32_0 = arith.constant 0 : i32
    %c0_i32_1 = arith.constant 0 : i32
    return %c0_i32, %c0_i32_0 : i32, i32
  }
  func.func @transform_3(%arg0: i32) -> (i32, i32) {
    %c0_i32 = arith.constant 0 : i32
    %c0_i32_0 = arith.constant 0 : i32
    return %arg0, %c0_i32 : i32, i32
  }
}

</mosaic_0001>

<llo_original>
// kernel: tpu_custom_call.1
$region0: #{tpu_custom_call.1}
  #allocation0 [shape = 'u32[]', space=smem, size = 0x4, offset = 0x4, fixed_abs, tag = 'smem constant byte address 0x4 - core index']
  #allocation1 [shape = 'u32[144,128]{1,0:T(1,128)}', space=vmem, size = 0x12000, scoped, tag = 'internal scratch']
  %s0 = inlined_call_operand.hbm [shape: f32[16,32], index: 0, kind: input, shape index: {}]
  %s1 = inlined_call_operand.hbm [shape: bf16[32,32], index: 1, kind: input, shape index: {}]
  %s2 = inlined_call_operand.vmem [shape: f32[1,32], index: 2, kind: input, shape index: {}]
  %s3 = inlined_call_operand.hbm [shape: f32[16,32], index: 3, kind: output, shape index: {}]
  %s4 = sld [smem:[#allocation0]]
  $region53: #{tpu_custom_call.1} parent=0
    _
  %s6 = ssub.s32 1, %s4
  %s7 = scalar_select 0, %s6, %s4
  $region1: #{tpu_custom_call.1} parent=0
    #allocation2 [shape = 'u8[8192]{0}', space=vmem, size = 0x2000, scoped, tag = 'input window, operand 0']
    #allocation3 [shape = 's32[2]{0}', space=sflag, size = 0x8, scoped, tag = 'scoped memory for tpu_custom_call.1']
    #allocation4 [shape = 's32[2]{0}', space=sflag, size = 0x8, scoped, tag = 'scoped memory for tpu_custom_call.1']
    #allocation5 [shape = 'u8[8192]{0}', space=vmem, size = 0x2000, scoped, tag = 'input window, operand 1, single buffered']
    #allocation6 [shape = 's32[1]{0}', space=sflag, size = 0x4, scoped, tag = 'scoped memory for tpu_custom_call.1']
    #allocation7 [shape = 'u8[8192]{0}', space=vmem, size = 0x2000, scoped, tag = 'output window, operand 0']
    %8 = vsyncpa [#allocation3], 0
    %s9 = scalar_lea.sflag [#allocation3], 1
    %10 = vsyncpa %s9, 0
    %11 = vsyncpa [#allocation6], 0
    %12 = vsyncpa [#allocation4], 0
    %s13 = scalar_lea.sflag [#allocation4], 1
    %14 = vsyncpa %s13, 0
    loop: start=0, step=1, limit=4
    $region2: #{tpu_custom_call.1} parent=1 // loop_pre_header
      _
    $region3: #{tpu_custom_call.1} parent=1 // loop_header
      %s16 = sphi 0, %s20
      %p17 = scmp.ge.s32.totalorder %s16, 4
      %s26 = sphi 0, %s28
      %s29 = sphi 0, %s26
      %s30 = sphi 0, %s29
      %s46 = sphi 0, %s30
      %s50 = sphi 0, %s50
      %s52 = sphi 0, %s50
      %s53 = sphi 0, %s52
      %s67 = sphi 0, %s53
      %s71 = sphi 0, %s71
      %s73 = sphi 0, %s71
      %s74 = sphi 0, %s73
      %s88 = sphi 0, %s74
      %s94 = sphi 0, %s96
      %s97 = sphi 0, %s94
      %s98 = sphi 0, %s97
      %s114 = sphi 0, %s98
    $region4: #{tpu_custom_call.1} parent=1 // loop_header_branch
      %19 = sbr.rel (%p17) target = $region8
    $region5: #{tpu_custom_call.1} parent=1 // loop_body
      %s21 = ssub.s32 %s16, 1
      %s22 = ssub.s32 %s16, 2
      %s23 = sadd.s32 %s16, 1
      %s24 = ssub.s32 %s16, %s23
      %p25 = scmp.eq.s32.totalorder %s24, 0
      %s27 = sadd.s32 %s26, 1
      %s28 = scalar_select %p25, %s26, %s27
      %p31 = pneg %p25
      %p32 = scmp.eq.s32.totalorder %s16, 1
      %p33 = por %p31, %p32
      %p34 = scmp.ne.s32.totalorder %s26, %s29
      %p35 = scmp.eq.s32.totalorder %s16, 0
      %p36 = por %p34, %p35
      %p37 = scmp.ne.s32.totalorder %s26, %s29
      %p38 = scmp.eq.s32.totalorder %s21, 1
      %p39 = por %p37, %p38
      %p40 = scmp.ne.s32.totalorder %s29, %s30
      %p41 = scmp.eq.s32.totalorder %s21, 0
      %p42 = por %p40, %p41
      %p43 = scmp.ne.s32.totalorder %s29, %s30
      %p44 = scmp.eq.s32.totalorder %s22, 1
      %p45 = por %p43, %p44
      %p47 = scmp.ne.s32.totalorder %s30, %s46
      %p48 = scmp.eq.s32.totalorder %s22, 0
      %p49 = por %p47, %p48
      %s51 = sadd.s32 %s50, 1
      %p54 = scmp.eq.s32.totalorder %s16, 1
      %p55 = scmp.ne.s32.totalorder %s50, %s52
      %p56 = scmp.eq.s32.totalorder %s16, 0
      %p57 = por %p55, %p56
      %p58 = scmp.ne.s32.totalorder %s50, %s52
      %p59 = scmp.eq.s32.totalorder %s21, 1
      %p60 = por %p58, %p59
      %p61 = scmp.ne.s32.totalorder %s52, %s53
      %p62 = scmp.eq.s32.totalorder %s21, 0
      %p63 = por %p61, %p62
      %p64 = scmp.ne.s32.totalorder %s52, %s53
      %p65 = scmp.eq.s32.totalorder %s22, 1
      %p66 = por %p64, %p65
      %p68 = scmp.ne.s32.totalorder %s53, %s67
      %p69 = scmp.eq.s32.totalorder %s22, 0
      %p70 = por %p68, %p69
      %s72 = sadd.s32 %s71, 1
      %p75 = scmp.eq.s32.totalorder %s16, 1
      %p76 = scmp.ne.s32.totalorder %s71, %s73
      %p77 = scmp.eq.s32.totalorder %s16, 0
      %p78 = por %p76, %p77
      %p79 = scmp.ne.s32.totalorder %s71, %s73
      %p80 = scmp.eq.s32.totalorder %s21, 1
      %p81 = por %p79, %p80
      %p82 = scmp.ne.s32.totalorder %s73, %s74
      %p83 = scmp.eq.s32.totalorder %s21, 0
      %p84 = por %p82, %p83
      %p85 = scmp.ne.s32.totalorder %s73, %s74
      %p86 = scmp.eq.s32.totalorder %s22, 1
      %p87 = por %p85, %p86
      %p89 = scmp.ne.s32.totalorder %s74, %s88
      %p90 = scmp.eq.s32.totalorder %s22, 0
      %p91 = por %p89, %p90
      %s92 = ssub.s32 %s16, %s23
      %p93 = scmp.eq.s32.totalorder %s92, 0
      %s95 = sadd.s32 %s94, 1
      %s96 = scalar_select %p93, %s94, %s95
      %p99 = pneg %p93
      %p100 = scmp.eq.s32.totalorder %s16, 1
      %p101 = por %p99, %p100
      %p102 = scmp.ne.s32.totalorder %s94, %s97
      %p103 = scmp.eq.s32.totalorder %s16, 0
      %p104 = por %p102, %p103
      %p105 = scmp.ne.s32.totalorder %s94, %s97
      %p106 = scmp.eq.s32.totalorder %s21, 1
      %p107 = por %p105, %p106
      %p108 = scmp.ne.s32.totalorder %s97, %s98
      %p109 = scmp.eq.s32.totalorder %s21, 0
      %p110 = por %p108, %p109
      %p111 = scmp.ne.s32.totalorder %s97, %s98
      %p112 = scmp.eq.s32.totalorder %s22, 1
      %p113 = por %p111, %p112
      %p115 = scmp.ne.s32.totalorder %s98, %s114
      %p116 = scmp.eq.s32.totalorder %s22, 0
      %p117 = por %p115, %p116
      %p118 = scmp.le.s32.totalorder 1, %s16
      %p119 = scmp.lt.s32.totalorder %s16, 3
      %p120 = pnand %p118, %p119
      %p121 = pneg %p120
      // Predicated region
      $region9: #{tpu_custom_call.1} parent=5 // pred_check
        _
      $region10: #{tpu_custom_call.1} parent=5 // pred_check_branch
        %123 = sbr.rel (%p120) target = $region12
      $region11: #{tpu_custom_call.1} parent=5 // pred_region
        %s124 = ssub.s32 %s16, 1
        // Predicated region
        $region13: #{tpu_custom_call.1} parent=11 // pred_check
          %p125 = pneg %p63
        $region14: #{tpu_custom_call.1} parent=11 // pred_check_branch
          %127 = sbr.rel (%p125) target = $region16
        $region15: #{tpu_custom_call.1} parent=11 // pred_region
          %s129 = ssub.s32 256, 256
          %130 = vsyncadd [#allocation6], %s129
          %s131 = sshll.u32 [#allocation5], 4
          %s132 = int_to_ptr.vmem [resolvable:$true] %s131
          %137 = dma.hbm_to_vmem [thread:$0]  %s1, 256, %s132, [#allocation6], 64, 64, 4
        $region16: #{tpu_custom_call.1} parent=11 // pred_fallthru
          _
        // Predicated region
        $region17: #{tpu_custom_call.1} parent=11 // pred_check
          %p138 = pneg %p84
        $region18: #{tpu_custom_call.1} parent=11 // pred_check_branch
          %140 = sbr.rel (%p138) target = $region20
        $region19: #{tpu_custom_call.1} parent=11 // pred_region
          _
        $region20: #{tpu_custom_call.1} parent=11 // pred_fallthru
          _
      $region12: #{tpu_custom_call.1} parent=5 // pred_fallthru
        _
      %p141 = scmp.lt.s32.totalorder %s16, 2
      // Predicated region
      $region21: #{tpu_custom_call.1} parent=5 // pred_check
        %p142 = pneg %p141
      $region22: #{tpu_custom_call.1} parent=5 // pred_check_branch
        %144 = sbr.rel (%p142) target = $region24
      $region23: #{tpu_custom_call.1} parent=5 // pred_region
        // Predicated region
        $region25: #{tpu_custom_call.1} parent=23 // pred_check
          %p145 = pneg %p36
        $region26: #{tpu_custom_call.1} parent=23 // pred_check_branch
          %147 = sbr.rel (%p145) target = $region28
        $region27: #{tpu_custom_call.1} parent=23 // pred_region
          %s148 = sand.u32 %s26, 1
          %s149 = scalar_lea.sflag [#allocation3], %s148
          %s150 = sand.u32 %s26, 1
          %s151 = smul.addr %s150, 8
          %s152 = scalar_lea.vmem [#allocation2], %s151
          %s154 = ssub.s32 128, 128
          %155 = vsyncadd %s149, %s154
          %s156 = smul.addr %s16, 128
          %s157 = scalar_lea.hbm %s0, %s156
          %s159 = sshll.u32 %s152, 4
          %s160 = int_to_ptr.vmem [resolvable:$true] %s159
          %162 = dma.hbm_to_vmem [thread:$0]  %s157, 128, %s160, %s149
        $region28: #{tpu_custom_call.1} parent=23 // pred_fallthru
          _
      $region24: #{tpu_custom_call.1} parent=5 // pred_fallthru
        _
      %p163 = scmp.le.s32.totalorder 1, %s16
      %p164 = scmp.lt.s32.totalorder %s16, 3
      %p165 = pnand %p163, %p164
      %p166 = pneg %p165
      // Predicated region
      $region29: #{tpu_custom_call.1} parent=5 // pred_check
        _
      $region30: #{tpu_custom_call.1} parent=5 // pred_check_branch
        %168 = sbr.rel (%p165) target = $region32
      $region31: #{tpu_custom_call.1} parent=5 // pred_region
        %s169 = ssub.s32 %s16, 1
        %s170 = sand.u32 %s29, 1
        %s171 = scalar_lea.sflag [#allocation3], %s170
        %s172 = sand.u32 %s29, 1
        %s173 = smul.addr %s172, 8
        %s174 = scalar_lea.vmem [#allocation2], %s173
        // Predicated region
        $region33: #{tpu_custom_call.1} parent=31 // pred_check
          %p175 = pneg %p42
        $region34: #{tpu_custom_call.1} parent=31 // pred_check_branch
          %177 = sbr.rel (%p175) target = $region36
        $region35: #{tpu_custom_call.1} parent=31 // pred_region
          %178 = dma.done %s171, 128
        $region36: #{tpu_custom_call.1} parent=31 // pred_fallthru
          _
        // Predicated region
        $region37: #{tpu_custom_call.1} parent=31 // pred_check
          %p179 = pneg %p63
        $region38: #{tpu_custom_call.1} parent=31 // pred_check_branch
          %181 = sbr.rel (%p179) target = $region40
        $region39: #{tpu_custom_call.1} parent=31 // pred_region
          %182 = dma.done [#allocation6], 256
        $region40: #{tpu_custom_call.1} parent=31 // pred_fallthru
          _
        %s183 = sand.u32 %s29, 1
        %s184 = scalar_lea.sflag [#allocation3], %s183
        %s185 = sand.u32 %s29, 1
        %s186 = smul.addr %s185, 8
        %s187 = scalar_lea.vmem [#allocation2], %s186
        %p188 = pneg %p42
        %p189 = pneg %p39
        %p190 = pneg %p63
        %p191 = pneg %p60
        %p192 = pneg %p84
        %p193 = pneg %p81
        %p194 = pneg %p110
        %p195 = pneg %p107
        %s196 = sand.u32 %s97, 1
        %s197 = scalar_lea.sflag [#allocation4], %s196
        %s198 = sand.u32 %s97, 1
        %s199 = smul.addr %s198, 8
        %s200 = scalar_lea.vmem [#allocation7], %s199
        %v202 = vld [vmem:[%s174] sm:$0xff]
        %v203 = vpack.c.bf16 %v202, %v202
        %v204 = vld [vmem:[#allocation5] sm:$0xf]
        %v205 = vld [vmem:[#allocation5 + $0x4] sm:$0xf]
        %v206 = vld [vmem:[#allocation5 + $0x8] sm:$0xf]
        %v207 = vld [vmem:[#allocation5 + $0xc] sm:$0xf]
        %v212 = vunpack.c.l.b16 %v204
        %v213 = vunpack.c.l.b16 %v205
        %v214 = vunpack.c.l.b16 %v206
        %v215 = vunpack.c.l.b16 %v207
        %v216 = vpack.c.b16 %v213, %v212
        %v217 = vpack.c.b16 %v215, %v214
        %vm220 = vcmask 261120
        %v222 = vsel %vm220, %v203, 0
        %224 = vmatprep.subr.bf16.mxu0 0
        %225 = vmatpush1.bf16.msra.mxu0 %v216
        %226 = vmatprep.subr.bf16.mxu0 0
        %227 = vmatpush1.bf16.msra.mxu0 %v217
        %228 = vmatprep.subr.bf16.mxu0 0
        %229 = vmatpush1.bf16.msra.mxu0 0
        %230 = vmatprep.subr.bf16.mxu0 0
        %231 = vmatpush1.bf16.msra.mxu0 0
        %232 = vmatprep.subr.bf16.mxu0 0
        %233 = vmatpush1.bf16.msra.mxu0 0
        %234 = vmatprep.subr.bf16.mxu0 0
        %235 = vmatpush1.bf16.msra.mxu0 0
        %236 = vmatprep.subr.bf16.mxu0 0
        %237 = vmatpush1.bf16.msra.mxu0 0
        %238 = vmatprep.subr.bf16.mxu0 0
        %239 = vmatpush1.bf16.msra.mxu0 0
        %240 = vmatprep.subr.bf16.mxu0 0
        %241 = vmatpush1.bf16.msra.mxu0 0
        %242 = vmatprep.subr.bf16.mxu0 0
        %243 = vmatpush1.bf16.msra.mxu0 0
        %244 = vmatprep.subr.bf16.mxu0 0
        %245 = vmatpush1.bf16.msra.mxu0 0
        %246 = vmatprep.subr.bf16.mxu0 0
        %247 = vmatpush1.bf16.msra.mxu0 0
        %248 = vmatprep.subr.bf16.mxu0 0
        %249 = vmatpush1.bf16.msra.mxu0 0
        %250 = vmatprep.subr.bf16.mxu0 0
        %251 = vmatpush1.bf16.msra.mxu0 0
        %252 = vmatprep.subr.bf16.mxu0 0
        %253 = vmatpush1.bf16.msra.mxu0 0
        %254 = vmatprep.subr.bf16.mxu0 0
        %255 = vmatpush1.bf16.msra.mxu0 0
        %256 = vmatprep.mubr.bf16.mxu0 0
        %257 = vmatmul.mubr.bf16.gmra.mrb[0].mxu0 %v222
        %v258 = vpop.f32.mrb[0].mxu0
        %v259 = vadd.f32 0.0, %v258
        %v260 = vpop.f32.mrb[0].mxu0
        %v261 = vpop.f32.mrb[0].mxu0
        %v262 = vpop.f32.mrb[0].mxu0
        %263 = vdwg.mxu0
        %v264 = vsel %vm220, %v259, 0.0
        %v265 = vrot.slane %v264, 4
        %v266 = vadd.f32 %v264, %v265
        %v267 = vrot.slane %v266, 2
        %v268 = vadd.f32 %v266, %v267
        %v269 = vrot.slane %v268, 1
        %v270 = vadd.f32 %v268, %v269
        %v271 = vadd.f32 %v259, %v270
        %v272 = vld [vmem:[%s2] sm:$0x1]
        %v274 = vlaneseq
        %v275 = vshrl.u32 %v274, 7
        %v276 = vsub.s32 0, %v275
        %v277 = vrot.slane %v272, %v276
        %v279 = vadd.f32 %v271, %v277
        %280 = vst.msk [vmem:[%s200] sm:$0xff] %vm220, %v279
        %s281 = sand.u32 %s97, 1
        %s282 = scalar_lea.sflag [#allocation4], %s281
        %s283 = sand.u32 %s97, 1
        %s284 = smul.addr %s283, 8
        %s285 = scalar_lea.vmem [#allocation7], %s284
        // Predicated region
        $region41: #{tpu_custom_call.1} parent=31 // pred_check
          %p286 = pneg %p107
        $region42: #{tpu_custom_call.1} parent=31 // pred_check_branch
          %288 = sbr.rel (%p286) target = $region44
        $region43: #{tpu_custom_call.1} parent=31 // pred_region
          %s290 = ssub.s32 128, 128
          %291 = vsyncadd %s282, %s290
          %s292 = smul.addr %s21, 128
          %s293 = scalar_lea.hbm %s3, %s292
          %s295 = sshll.u32 %s285, 4
          %s296 = int_to_ptr.vmem [resolvable:$true] %s295
          %298 = dma.vmem_to_hbm [thread:$0]  %s296, 128, %s293, %s282
        $region44: #{tpu_custom_call.1} parent=31 // pred_fallthru
          _
      $region32: #{tpu_custom_call.1} parent=5 // pred_fallthru
        _
      %p299 = scmp.le.s32.totalorder 2, %s16
      // Predicated region
      $region45: #{tpu_custom_call.1} parent=5 // pred_check
        %p300 = pneg %p299
      $region46: #{tpu_custom_call.1} parent=5 // pred_check_branch
        %302 = sbr.rel (%p300) target = $region48
      $region47: #{tpu_custom_call.1} parent=5 // pred_region
        %s303 = ssub.s32 %s16, 2
        // Predicated region
        $region49: #{tpu_custom_call.1} parent=47 // pred_check
          %p304 = pneg %p113
        $region50: #{tpu_custom_call.1} parent=47 // pred_check_branch
          %306 = sbr.rel (%p304) target = $region52
        $region51: #{tpu_custom_call.1} parent=47 // pred_region
          %s307 = sand.u32 %s98, 1
          %s308 = scalar_lea.sflag [#allocation4], %s307
          %s309 = sand.u32 %s98, 1
          %s310 = smul.addr %s309, 8
          %s311 = scalar_lea.vmem [#allocation7], %s310
          %312 = dma.done %s308, 128
        $region52: #{tpu_custom_call.1} parent=47 // pred_fallthru
          _
      $region48: #{tpu_custom_call.1} parent=5 // pred_fallthru
        _
    $region6: #{tpu_custom_call.1} parent=1 // loop_footer
      %s20 = sadd.s32 1, %s16
    $region7: #{tpu_custom_call.1} parent=1 // loop_footer_branch
      %15 = sbr.rel target = $region3
    $region8: #{tpu_custom_call.1} parent=1 // loop_exit
      _
    %313 = vsyncpa [#allocation3], 1
    %s314 = scalar_lea.sflag [#allocation3], 1
    %315 = vsyncpa %s314, 1
    %316 = vsyncpa [#allocation6], 1
    %317 = vsyncpa [#allocation4], 1
    %s318 = scalar_lea.sflag [#allocation4], 1
    %319 = vsyncpa %s318, 1

</llo_original>
